<compile_context>
chip_gen: v7x
topology: tpu7x:2x2x1
jax: 0.10.0
libtpu: 0.0.40
codegen_flags: <defaults>
</compile_context>

<pallas_src>
import functools

import jax
import jax.numpy as jnp
from jax.experimental import pallas as pl
from jax.experimental.pallas import tpu as pltpu


def _identity_dma_kernel(x_hbm_ref, o_hbm_ref, copy_sem):
    # Single HBM->HBM DMA: o = x (matches SimpleModel.forward's `return x`).
    # No VMEM staging, no grid, no vector load/store work.
    copy = pltpu.make_async_copy(x_hbm_ref, o_hbm_ref, copy_sem)
    copy.start()
    copy.wait()


@functools.partial(jax.jit, static_argnames=("use_pallas",))
def simple_model_forward(x, use_pallas: bool = False):
    """Identity forward pass of SimpleModel.

    Default (use_pallas=False) is the zero-cost path: `return x` — the only
    implementation that is optimal on every TPU generation. use_pallas=True
    runs an explicit on-TPU pass-through as one HBM->HBM DMA (debug/demo).
    """
    if not use_pallas:
        return x

    return pl.pallas_call(
        _identity_dma_kernel,
        out_shape=jax.ShapeDtypeStruct(x.shape, x.dtype),
        # Raw HBM refs on both sides: no auto-pipelining, no VMEM bounce.
        in_specs=[pl.BlockSpec(memory_space=pl.ANY)],
        out_specs=pl.BlockSpec(memory_space=pl.ANY),
        scratch_shapes=[pltpu.SemaphoreType.DMA(())],
    )(x)


def init_simple_model_params(key):
    """Deterministic parameter init mirroring SimpleModel.__init__ shapes.

    These parameters are dead with respect to forward() (exactly like the
    PyTorch module), so they are created outside the compiled hot path and
    never touched by the kernel.
    """
    k = jax.random.split(key, 3)
    return {
        # nn.Conv2d(3, 16, 3): weight [16, 3, 3, 3], bias [16]
        "conv1_w": jax.random.normal(k[0], (16, 3, 3, 3), jnp.float32) * 0.1,
        "conv1_b": jnp.zeros((16,), jnp.float32),
        # nn.BatchNorm2d(16): gamma/beta/running_mean/running_var [16]
        "bn1_gamma": jnp.ones((16,), jnp.float32),
        "bn1_beta": jnp.zeros((16,), jnp.float32),
        "bn1_mean": jnp.zeros((16,), jnp.float32),
        "bn1_var": jnp.ones((16,), jnp.float32),
        # nn.Linear(16*28*28, 128): weight [128, 12544], bias [128]
        "fc1_w": jax.random.normal(k[1], (128, 16 * 28 * 28), jnp.float32) * 0.01,
        "fc1_b": jnp.zeros((128,), jnp.float32),
        # nn.Linear(128, 10): weight [10, 128], bias [10]
        "fc2_w": jax.random.normal(k[2], (10, 128), jnp.float32) * 0.01,
        "fc2_b": jnp.zeros((10,), jnp.float32),
        # nn.Dropout(0.5) has no parameters; identity in eval and unused here.
    }


if __name__ == "__main__":
    key = jax.random.PRNGKey(0)
    pkey, xkey = jax.random.split(key)

    # Parameters (unused by forward, same as the PyTorch module); kept out of
    # the compiled forward path.
    params = init_simple_model_params(pkey)

    # Input consistent with the module's __init__: Conv2d(3,16,3) on a 30x30
    # input -> 28x28, matching fc1's 16*28*28 fan-in. Layout: NCHW.
    x = jax.random.normal(xkey, (2, 3, 30, 30), jnp.float32)

    # Pallas pass-through kernel: single HBM->HBM DMA, no VMEM staging.
    y = jax.block_until_ready(simple_model_forward(x, use_pallas=True))
    assert y.shape == x.shape and y.dtype == x.dtype
    assert bool(jnp.array_equal(y, x))

    # Zero-cost default path (the recommended production route for an
    # identity forward): must agree exactly.
    y_fast = jax.block_until_ready(simple_model_forward(x))
    assert bool(jnp.array_equal(y_fast, x))

    print("KERNEL_OK")
</pallas_src>

<mosaic_0001>
module attributes {stable_mosaic.version = 11 : i64} {
  func.func @_identity_dma_kernel(%arg0: memref<2x3x30x30xf32, #tpu.memory_space<any>>, %arg1: memref<2x3x30x30xf32, #tpu.memory_space<any>>, %arg2: memref<!tpu.dma_semaphore, #tpu.memory_space<semaphore_mem>>) attributes {dimension_semantics = [], scalar_prefetch = 0 : i64, scratch_operands = 1 : i64, tpu.core_type = #tpu.core_type<tc>} {
    tpu.enqueue_dma source(%arg0 : memref<2x3x30x30xf32, #tpu.memory_space<any>>) target(%arg1 : memref<2x3x30x30xf32, #tpu.memory_space<any>>) target_semaphore(%arg2 : memref<!tpu.dma_semaphore, #tpu.memory_space<semaphore_mem>>)
    tpu.wait_dma2 semaphore(%arg2 : memref<!tpu.dma_semaphore, #tpu.memory_space<semaphore_mem>>) src(%arg0 : memref<2x3x30x30xf32, #tpu.memory_space<any>>) dst(%arg1 : memref<2x3x30x30xf32, #tpu.memory_space<any>>)
    return
  }
}

</mosaic_0001>

<llo_original>
// kernel: simple_model_forward.1
$region0: #{simple_model_forward.1}
  #allocation0 [shape = 'u32[]', space=smem, size = 0x4, offset = 0x4, fixed_abs, tag = 'smem constant byte address 0x4 - core index']
  #allocation1 [shape = 'u32[144,128]{1,0:T(1,128)}', space=vmem, size = 0x12000, scoped, tag = 'internal scratch']
  #allocation2 [shape = 's32[1]{0}', space=sflag, size = 0x4, scoped, tag = 'scratch operand']
  #allocation3 [shape = 's32[]', space=sflag, size = 0x4, offset = 0, fixed_abs, tag = 'sflag constant byte address 0x0 - dummy sync flag']
  %s0 = inlined_call_operand.vmem [shape: f32[2,3,30,30], index: 0, kind: input, shape index: {}]
  %s1 = inlined_call_operand.vmem [shape: f32[2,3,30,30], index: 1, kind: output, shape index: {}]
  %s2 = sld [smem:[#allocation0]]
  $region39: #{simple_model_forward.1} parent=0
    _
  %s4 = ssub.s32 1, %s2
  %s5 = scalar_select 0, %s4, %s2
  %p7 = scmp.lt.u32.totalorder 30, 8
  %p8 = pneg %p7
  // Predicated region
  $region2: #{simple_model_forward.1} parent=0 // pred_check
    _
  $region3: #{simple_model_forward.1} parent=0 // pred_check_branch
    %10 = sbr.rel (%p7) target = $region5
  $region4: #{simple_model_forward.1} parent=0 // pred_region
    %s35 = sand.u32 30, 7
    %p36 = scmp.eq.s32.totalorder %s35, 0
    %p37 = pneg %p36
    // Predicated region
    $region17: #{simple_model_forward.1} parent=4 // pred_check
      _
    $region18: #{simple_model_forward.1} parent=4 // pred_check_branch
      %39 = sbr.rel (%p36) target = $region20
    $region19: #{simple_model_forward.1} parent=4 // pred_region
      %s40 = sand.u32 30, 7
      %s41 = ssub.s32 30, %s40
      %s42 = scalar_lea.vmem %s0, %s41
      %s43 = ssub.s32 30, %s40
      %s44 = scalar_lea.vmem %s1, %s43
      loop: start=0, step=1, limit=1
      $region21: #{simple_model_forward.1} parent=19 // loop_pre_header
        _
      $region22: #{simple_model_forward.1} parent=19 // loop_header
        %s46 = sphi 0, %s50
        %p47 = scmp.ge.s32.totalorder %s46, 1
        %s51 = sphi %s0, %s0
        %s52 = sphi %s1, %s1
      $region23: #{simple_model_forward.1} parent=19 // loop_header_branch
        %49 = sbr.rel (%p47) target = $region27
      $region24: #{simple_model_forward.1} parent=19 // loop_body
        %v53 = vld [vmem:[%s51] sm:$0xff]
        %54 = vst [vmem:[%s52] sm:$0xff] %v53
        %v55 = vld [vmem:[%s51 + $0x8] sm:$0xff]
        %56 = vst [vmem:[%s52 + $0x8] sm:$0xff] %v55
        %v57 = vld [vmem:[%s51 + $0x10] sm:$0xff]
        %58 = vst [vmem:[%s52 + $0x10] sm:$0xff] %v57
        %v59 = vld [vmem:[%s51 + $0x20] sm:$0xff]
        %60 = vst [vmem:[%s52 + $0x20] sm:$0xff] %v59
        %v61 = vld [vmem:[%s51 + $0x28] sm:$0xff]
        %62 = vst [vmem:[%s52 + $0x28] sm:$0xff] %v61
        %v63 = vld [vmem:[%s51 + $0x30] sm:$0xff]
        %64 = vst [vmem:[%s52 + $0x30] sm:$0xff] %v63
        %v65 = vld [vmem:[%s51 + $0x40] sm:$0xff]
        %66 = vst [vmem:[%s52 + $0x40] sm:$0xff] %v65
        %v67 = vld [vmem:[%s51 + $0x48] sm:$0xff]
        %68 = vst [vmem:[%s52 + $0x48] sm:$0xff] %v67
        %v69 = vld [vmem:[%s51 + $0x50] sm:$0xff]
        %70 = vst [vmem:[%s52 + $0x50] sm:$0xff] %v69
        %v71 = vld [vmem:[%s51 + $0x60] sm:$0xff]
        %72 = vst [vmem:[%s52 + $0x60] sm:$0xff] %v71
        %v73 = vld [vmem:[%s51 + $0x68] sm:$0xff]
        %74 = vst [vmem:[%s52 + $0x68] sm:$0xff] %v73
        %v75 = vld [vmem:[%s51 + $0x70] sm:$0xff]
        %76 = vst [vmem:[%s52 + $0x70] sm:$0xff] %v75
        %v77 = vld [vmem:[%s51 + $0x80] sm:$0xff]
        %78 = vst [vmem:[%s52 + $0x80] sm:$0xff] %v77
        %v79 = vld [vmem:[%s51 + $0x88] sm:$0xff]
        %80 = vst [vmem:[%s52 + $0x88] sm:$0xff] %v79
        %v81 = vld [vmem:[%s51 + $0x90] sm:$0xff]
        %82 = vst [vmem:[%s52 + $0x90] sm:$0xff] %v81
        %v83 = vld [vmem:[%s51 + $0xa0] sm:$0xff]
        %84 = vst [vmem:[%s52 + $0xa0] sm:$0xff] %v83
        %v85 = vld [vmem:[%s51 + $0xa8] sm:$0xff]
        %86 = vst [vmem:[%s52 + $0xa8] sm:$0xff] %v85
        %v87 = vld [vmem:[%s51 + $0xb0] sm:$0xff]
        %88 = vst [vmem:[%s52 + $0xb0] sm:$0xff] %v87
      $region25: #{simple_model_forward.1} parent=19 // loop_footer
        %s50 = sadd.s32 1, %s46
      $region26: #{simple_model_forward.1} parent=19 // loop_footer_branch
        %45 = sbr.rel target = $region22
      $region27: #{simple_model_forward.1} parent=19 // loop_exit
        _
      %s89 = sshllo.u32 0, %s40
      loop: start=0, step=1, limit=1
      $region28: #{simple_model_forward.1} parent=19 // loop_pre_header
        _
      $region29: #{simple_model_forward.1} parent=19 // loop_header
        %s91 = sphi 0, %s95
        %p92 = scmp.ge.s32.totalorder %s91, 1
        %s96 = sphi %s42, %s42
        %s97 = sphi %s44, %s44
      $region30: #{simple_model_forward.1} parent=19 // loop_header_branch
        %94 = sbr.rel (%p92) target = $region34
      $region31: #{simple_model_forward.1} parent=19 // loop_body
        %v98 = vld [vmem:[%s96] sm:%s89]
        %99 = vst [vmem:[%s97] sm:%s89] %v98
        %v100 = vld [vmem:[%s96 + $0x20] sm:%s89]
        %101 = vst [vmem:[%s97 + $0x20] sm:%s89] %v100
        %v102 = vld [vmem:[%s96 + $0x40] sm:%s89]
        %103 = vst [vmem:[%s97 + $0x40] sm:%s89] %v102
        %v104 = vld [vmem:[%s96 + $0x60] sm:%s89]
        %105 = vst [vmem:[%s97 + $0x60] sm:%s89] %v104
        %v106 = vld [vmem:[%s96 + $0x80] sm:%s89]
        %107 = vst [vmem:[%s97 + $0x80] sm:%s89] %v106
        %v108 = vld [vmem:[%s96 + $0xa0] sm:%s89]
        %109 = vst [vmem:[%s97 + $0xa0] sm:%s89] %v108
      $region32: #{simple_model_forward.1} parent=19 // loop_footer
        %s95 = sadd.s32 1, %s91
      $region33: #{simple_model_forward.1} parent=19 // loop_footer_branch
        %90 = sbr.rel target = $region29
      $region34: #{simple_model_forward.1} parent=19 // loop_exit
        _
    $region20: #{simple_model_forward.1} parent=4 // pred_fallthru
      _
  $region5: #{simple_model_forward.1} parent=0 // pred_fallthru
    _
  // Predicated region
  $region6: #{simple_model_forward.1} parent=0 // pred_check
    %p11 = pneg %p7
  $region7: #{simple_model_forward.1} parent=0 // pred_check_branch
    %13 = sbr.rel (%p11) target = $region9
  $region8: #{simple_model_forward.1} parent=0 // pred_region
    %s14 = sshllo.u32 0, 30
    loop: start=0, step=1, limit=1
    $region10: #{simple_model_forward.1} parent=8 // loop_pre_header
      _
    $region11: #{simple_model_forward.1} parent=8 // loop_header
      %s16 = sphi 0, %s20
      %p17 = scmp.ge.s32.totalorder %s16, 1
      %s21 = sphi %s0, %s0
      %s22 = sphi %s1, %s1
    $region12: #{simple_model_forward.1} parent=8 // loop_header_branch
      %19 = sbr.rel (%p17) target = $region16
    $region13: #{simple_model_forward.1} parent=8 // loop_body
      %v23 = vld [vmem:[%s21] sm:%s14]
      %24 = vst [vmem:[%s22] sm:%s14] %v23
      %v25 = vld [vmem:[%s21 + $0x20] sm:%s14]
      %26 = vst [vmem:[%s22 + $0x20] sm:%s14] %v25
      %v27 = vld [vmem:[%s21 + $0x40] sm:%s14]
      %28 = vst [vmem:[%s22 + $0x40] sm:%s14] %v27
      %v29 = vld [vmem:[%s21 + $0x60] sm:%s14]
      %30 = vst [vmem:[%s22 + $0x60] sm:%s14] %v29
      %v31 = vld [vmem:[%s21 + $0x80] sm:%s14]
      %32 = vst [vmem:[%s22 + $0x80] sm:%s14] %v31
      %v33 = vld [vmem:[%s21 + $0xa0] sm:%s14]
      %34 = vst [vmem:[%s22 + $0xa0] sm:%s14] %v33
    $region14: #{simple_model_forward.1} parent=8 // loop_footer
      %s20 = sadd.s32 1, %s16
    $region15: #{simple_model_forward.1} parent=8 // loop_footer_branch
      %15 = sbr.rel target = $region11
    $region16: #{simple_model_forward.1} parent=8 // loop_exit
      _
  $region9: #{simple_model_forward.1} parent=0 // pred_fallthru
    _
  // Predicated region
  $region35: #{simple_model_forward.1} parent=0 // pred_check
    _
  $region36: #{simple_model_forward.1} parent=0 // pred_check_branch
    %112 = sbr.rel (0) target = $region38
  $region37: #{simple_model_forward.1} parent=0 // pred_region
    %113 = vsyncadd [#allocation2], 2880
  $region38: #{simple_model_forward.1} parent=0 // pred_fallthru
    _
  %s114 = smul.u32 2, 3
  %s115 = smul.u32 %s114, 30
  %s116 = smul.u32 %s115, 1
  %s117 = sshll.u32 %s116, 4
  %118 = dma.done [#allocation2], %s117
  %119 = vsyncmov [#allocation2]
  %s120 = vpop.sfrf %119
  %p121 = scmp.eq.s32.totalorder %s120, 0
  %p122 = pneg %p121
  %124 = shalt.err (%p122)

</llo_original>
